<compile_context>
chip_gen: v7x
topology: tpu7x:2x2x1
jax: 0.10.0
libtpu: 0.0.40
codegen_flags: <defaults>
</compile_context>

<pallas_src>
import math
import functools

import jax
import jax.numpy as jnp
from jax.experimental import pallas as pl
from jax.experimental.pallas import tpu as pltpu


# ----------------------------------------------------------------------------
# helpers (f32 element-wise math; only matmul operands are cast to bf16)
# ----------------------------------------------------------------------------
def _layer_norm(x, w, b, eps):
    mean = jnp.mean(x, axis=-1, keepdims=True)
    var = jnp.mean((x - mean) ** 2, axis=-1, keepdims=True)
    return (x - mean) * jax.lax.rsqrt(var + eps) * w + b


def _gelu_tanh(x):
    c = math.sqrt(2.0 / math.pi)
    return 0.5 * x * (1.0 + jnp.tanh(c * (x + 0.044715 * x * x * x)))


def _default_vmem_limit_bytes():
    """Chip-aware scoped-VMEM limit: ~100 MiB on 128 MiB chips, ~48 MiB on v7x."""
    try:
        cap = int(getattr(pltpu.get_tpu_info(), "vmem_capacity_bytes", 0) or 0)
    except Exception:
        cap = 0
    if cap >= (32 << 20):
        return int(min(cap - (16 << 20), 100 << 20))
    return 48 << 20  # conservative fallback (safe on v7x's 64 MiB VMEM)


def _const_spec(a):
    """Whole-array block with a constant index map; single-buffered (the block
    never changes, so double-buffering it just wastes VMEM)."""
    ndim = a.ndim
    shape = a.shape
    kwargs = {}
    if hasattr(pl, "Buffered"):
        kwargs["pipeline_mode"] = pl.Buffered(1)
    return pl.BlockSpec(shape, lambda *_: (0,) * ndim, **kwargs)


def _mlp_weight_spec(shape, index_map, n_steps):
    """MLP weight tiles: single-buffer when the block is constant (n_steps==1),
    otherwise keep default double-buffering so DMA overlaps compute."""
    if n_steps == 1 and hasattr(pl, "Buffered"):
        return pl.BlockSpec(shape, index_map, pipeline_mode=pl.Buffered(1))
    return pl.BlockSpec(shape, index_map)


def _pick_seq_tile(S, pref):
    if pref is None:
        pref = 256
    if pref >= S:
        return S
    if S % pref == 0 and pref % 8 == 0:
        return pref
    for t in (512, 256, 128, 64, 32, 16, 8):
        if t <= S and S % t == 0:
            return t
    return S


def _pick_inter_tile(I, pref):
    if pref is not None:
        if pref >= I:
            return I
        if I % pref == 0 and pref % 128 == 0:
            return pref
    for t in (1024, 512, 256, 128):
        if I % t == 0:
            return t
    # TODO(synk): intermediate dims with no 128-multiple divisor (e.g. so400m's
    # 4304) fall back to a single full-width (D,I) block; lane-tiling that case
    # needs element-indexed specs.
    return I


# ----------------------------------------------------------------------------
# kernel 1: LayerNorm1 + fused QKV projection, head-major outputs
#           grid = (B, S // TQ)
# ----------------------------------------------------------------------------
def _ln1_qkv_kernel(x_ref, ln_w_ref, ln_b_ref, wqkv_ref, bqkv_ref,
                    q_ref, k_ref, v_ref, *, eps, num_heads, head_dim):
    x = x_ref[...]                                            # (TQ, D) f32
    h = _layer_norm(x, ln_w_ref[...], ln_b_ref[...], eps)
    h = h.astype(wqkv_ref.dtype)                              # bf16 for MXU
    qkv = jnp.dot(h, wqkv_ref[...],
                  preferred_element_type=jnp.float32) + bqkv_ref[...]
    d = num_heads * head_dim
    # Write per-head lane slices straight into the head-major (H, TQ, hd)
    # output blocks (no wrapper-side transpose afterwards).
    for hh in range(num_heads):
        lo = hh * head_dim
        q_ref[hh] = qkv[:, lo:lo + head_dim].astype(q_ref.dtype)
        k_ref[hh] = qkv[:, d + lo:d + lo + head_dim].astype(k_ref.dtype)
        v_ref[hh] = qkv[:, 2 * d + lo:2 * d + lo + head_dim].astype(v_ref.dtype)


# ----------------------------------------------------------------------------
# kernel 2: attention (full K/V resident per batch) + out-proj + residual
#           grid = (B, S // TQ)
# ----------------------------------------------------------------------------
def _attn_kernel(x_ref, q_ref, k_ref, v_ref, wo_ref, bo_ref, o_ref,
                 attn_scr, *, num_heads, head_dim):
    f32 = jnp.float32
    # Per-head softmax(QK^T)V; each head's (TQ, hd) result lands in a lane
    # slice of the lane-dense (TQ, D) f32 scratch.  Only one head's (TQ, S)
    # score tile is live at a time (bounded vreg/VMEM footprint).
    for h in range(num_heads):
        qh = q_ref[h]                                         # (TQ, hd) bf16, pre-scaled
        kh = k_ref[h]                                         # (S,  hd) bf16
        vh = v_ref[h]                                         # (S,  hd) bf16
        s = jax.lax.dot_general(qh, kh, (((1,), (1,)), ((), ())),
                                preferred_element_type=f32)   # (TQ, S)
        m = jnp.max(s, axis=-1, keepdims=True)
        p = jnp.exp(s - m)
        l = jnp.sum(p, axis=-1, keepdims=True)
        pv = jnp.dot(p.astype(vh.dtype), vh,
                     preferred_element_type=f32)              # (TQ, hd)
        inv_l = pl.reciprocal(l, approx=True)                 # EUP, off the VALU path
        lo = h * head_dim
        attn_scr[:, lo:lo + head_dim] = pv * inv_l

    # Single full-K out-projection matmul over the lane-dense (TQ, D) buffer.
    attn = attn_scr[...].astype(wo_ref.dtype)                 # (TQ, D) bf16
    y = jnp.dot(attn, wo_ref[...], preferred_element_type=f32)
    o_ref[...] = (x_ref[...] + y + bo_ref[...]).astype(o_ref.dtype)


# ----------------------------------------------------------------------------
# kernel 3: LayerNorm2 + MLP (intermediate-tiled K-reduction) + residual
#           grid = (B, S // TQ, I // TI), intermediate axis last & "arbitrary"
# ----------------------------------------------------------------------------
def _ln2_mlp_kernel(h_ref, ln_w_ref, ln_b_ref, w1_ref, b1_ref, w2_ref, b2_ref,
                    o_ref, acc_ref, ln_ref, *, eps):
    ji = pl.program_id(2)

    @pl.when(ji == 0)
    def _():
        acc_ref[...] = jnp.zeros_like(acc_ref)
        # LN2 hoisted out of the intermediate-tile loop: computed once per
        # query tile into a bf16 scratch, reused for all I-tiles.
        h = h_ref[...]
        ln_ref[...] = _layer_norm(h, ln_w_ref[...], ln_b_ref[...],
                                  eps).astype(ln_ref.dtype)

    a = jnp.dot(ln_ref[...], w1_ref[...],
                preferred_element_type=jnp.float32) + b1_ref[...]
    a = _gelu_tanh(a).astype(w2_ref.dtype)                    # bf16
    acc_ref[...] += jnp.dot(a, w2_ref[...],
                            preferred_element_type=jnp.float32)

    @pl.when(ji == pl.num_programs(2) - 1)
    def _():
        o_ref[...] = (h_ref[...] + acc_ref[...] + b2_ref[...]).astype(o_ref.dtype)


# ----------------------------------------------------------------------------
# one-time parameter preparation (outside the forward path)
# ----------------------------------------------------------------------------
def prepare_layer_params(params, *, num_heads, compute_dtype=jnp.bfloat16):
    (ln1w, ln1b, wq, bq, wk, bk, wv, bv, wo, bo,
     ln2w, ln2b, w1, b1, w2, b2) = params
    f32 = jnp.float32
    D = wq.shape[0]
    head_dim = D // num_heads
    scale = head_dim ** (-0.5)

    def row(v):
        return jnp.asarray(v, f32).reshape(1, -1)

    return dict(
        num_heads=num_heads,
        head_dim=head_dim,
        ln1w=row(ln1w), ln1b=row(ln1b),
        # fused QKV weight (D, 3D); attention scale folded into the Q columns /
        # Q bias so the kernel never multiplies the score matrix by `scale`.
        wqkv=jnp.concatenate([jnp.asarray(wq, f32) * scale,
                              jnp.asarray(wk, f32),
                              jnp.asarray(wv, f32)], axis=1).astype(compute_dtype),
        bqkv=jnp.concatenate([row(bq) * scale, row(bk), row(bv)], axis=1),
        wo=jnp.asarray(wo).astype(compute_dtype), bo=row(bo),
        ln2w=row(ln2w), ln2b=row(ln2b),
        w1=jnp.asarray(w1).astype(compute_dtype), b1=row(b1),
        w2=jnp.asarray(w2).astype(compute_dtype), b2=row(b2),
    )


def prepare_encoder_params(layer_params, *, num_heads, compute_dtype=jnp.bfloat16):
    return [prepare_layer_params(p, num_heads=num_heads, compute_dtype=compute_dtype)
            for p in layer_params]


# ----------------------------------------------------------------------------
# one encoder layer
# ----------------------------------------------------------------------------
def siglip_encoder_layer(x, p, *, layer_norm_eps, tq=256, ti=None,
                         vmem_limit_bytes=None):
    B, S, D = x.shape
    H, hd = p["num_heads"], p["head_dim"]
    I = p["w1"].shape[1]
    cdt = p["wqkv"].dtype

    tq = _pick_seq_tile(S, tq)
    ti = _pick_inter_tile(I, ti)
    nq, ni = S // tq, I // ti

    if vmem_limit_bytes is None:
        vmem_limit_bytes = _default_vmem_limit_bytes()

    def cp(sem):
        return pltpu.CompilerParams(dimension_semantics=sem,
                                    vmem_limit_bytes=vmem_limit_bytes)

    row3 = lambda b, i: (b, i, 0)
    head_tile = lambda b, i: (b, 0, i, 0)
    head_full = lambda b, i: (b, 0, 0, 0)     # constant within a batch -> resident K/V

    # ---- 1) LN1 + fused QKV (head-major outputs) ----------------------------
    q, k, v = pl.pallas_call(
        functools.partial(_ln1_qkv_kernel, eps=layer_norm_eps,
                          num_heads=H, head_dim=hd),
        grid=(B, nq),
        in_specs=[pl.BlockSpec((None, tq, D), row3),
                  _const_spec(p["ln1w"]), _const_spec(p["ln1b"]),
                  _const_spec(p["wqkv"]), _const_spec(p["bqkv"])],
        out_specs=[pl.BlockSpec((None, H, tq, hd), head_tile)] * 3,
        out_shape=[jax.ShapeDtypeStruct((B, H, S, hd), cdt)] * 3,
        compiler_params=cp(("parallel", "parallel")),
    )(x, p["ln1w"], p["ln1b"], p["wqkv"], p["bqkv"])

    # ---- 2) attention (resident K/V) + out-proj + residual -------------------
    h_res = pl.pallas_call(
        functools.partial(_attn_kernel, num_heads=H, head_dim=hd),
        grid=(B, nq),
        in_specs=[pl.BlockSpec((None, tq, D), row3),            # residual x
                  pl.BlockSpec((None, H, tq, hd), head_tile),   # Q tile
                  pl.BlockSpec((None, H, S, hd), head_full),    # K, full sequence
                  pl.BlockSpec((None, H, S, hd), head_full),    # V, full sequence
                  _const_spec(p["wo"]), _const_spec(p["bo"])],
        out_specs=pl.BlockSpec((None, tq, D), row3),
        out_shape=jax.ShapeDtypeStruct((B, S, D), x.dtype),
        scratch_shapes=[pltpu.VMEM((tq, D), jnp.float32)],      # lane-dense attn buffer
        compiler_params=cp(("parallel", "parallel")),
    )(x, q, k, v, p["wo"], p["bo"])

    # ---- 3) LN2 + MLP (K-reduction over intermediate tiles) + residual ------
    out = pl.pallas_call(
        functools.partial(_ln2_mlp_kernel, eps=layer_norm_eps),
        grid=(B, nq, ni),
        in_specs=[pl.BlockSpec((None, tq, D), lambda b, i, j: (b, i, 0)),
                  _const_spec(p["ln2w"]), _const_spec(p["ln2b"]),
                  _mlp_weight_spec((D, ti), lambda b, i, j: (0, j), ni),
                  _mlp_weight_spec((1, ti), lambda b, i, j: (0, j), ni),
                  _mlp_weight_spec((ti, D), lambda b, i, j: (j, 0), ni),
                  _const_spec(p["b2"])],
        out_specs=pl.BlockSpec((None, tq, D), lambda b, i, j: (b, i, 0)),
        out_shape=jax.ShapeDtypeStruct((B, S, D), x.dtype),
        scratch_shapes=[pltpu.VMEM((tq, D), jnp.float32),       # fc2 accumulator
                        pltpu.VMEM((tq, D), cdt)],              # hoisted LN2(h) in bf16
        compiler_params=cp(("parallel", "parallel", "arbitrary")),
    )(h_res, p["ln2w"], p["ln2b"], p["w1"], p["b1"], p["w2"], p["b2"])

    return out


# ----------------------------------------------------------------------------
# full encoder = stack of layers (expects prepared params)
# ----------------------------------------------------------------------------
def siglip_encoder(x, prepared_layers, *, layer_norm_eps, **kw):
    h = x
    for p in prepared_layers:
        h = siglip_encoder_layer(h, p, layer_norm_eps=layer_norm_eps, **kw)
    return h


# ----------------------------------------------------------------------------
# pure-JAX f32 reference (mirrors the PyTorch forward)
# ----------------------------------------------------------------------------
def _reference_layer(x, params, *, num_heads, eps):
    (ln1w, ln1b, wq, bq, wk, bk, wv, bv, wo, bo,
     ln2w, ln2b, w1, b1, w2, b2) = params
    B, S, D = x.shape
    hd = D // num_heads
    scale = hd ** (-0.5)

    def ln(y, w, b):
        mu = y.mean(-1, keepdims=True)
        var = ((y - mu) ** 2).mean(-1, keepdims=True)
        return (y - mu) / jnp.sqrt(var + eps) * w + b

    res = x
    h = ln(x, ln1w, ln1b)
    q = (h @ wq + bq).reshape(B, S, num_heads, hd).transpose(0, 2, 1, 3)
    k = (h @ wk + bk).reshape(B, S, num_heads, hd).transpose(0, 2, 1, 3)
    v = (h @ wv + bv).reshape(B, S, num_heads, hd).transpose(0, 2, 1, 3)
    aw = jnp.einsum("bhqd,bhkd->bhqk", q, k) * scale
    aw = jax.nn.softmax(aw.astype(jnp.float32), axis=-1)
    ao = jnp.einsum("bhqk,bhkd->bhqd", aw, v)
    ao = ao.transpose(0, 2, 1, 3).reshape(B, S, D)
    h = res + (ao @ wo + bo)
    res = h
    m = ln(h, ln2w, ln2b)
    m = jax.nn.gelu(m @ w1 + b1, approximate=True)
    return res + (m @ w2 + b2)


def _reference_encoder(x, layer_params, *, num_heads, eps):
    for p in layer_params:
        x = _reference_layer(x, p, num_heads=num_heads, eps=eps)
    return x


if __name__ == "__main__":
    # Small shapes consistent with the module: (batch, seq, hidden)
    B, S, D = 2, 16, 32
    num_heads = 4           # head_dim = 8
    intermediate = 256      # exercises intermediate-dim tiling (ti=128)
    num_layers = 2
    eps = 1e-6

    key = jax.random.PRNGKey(0)
    keys = jax.random.split(key, num_layers + 1)

    def n(k, shape, s=0.05):
        return (s * jax.random.normal(k, shape)).astype(jnp.float32)

    def make_layer_params(k):
        ks = jax.random.split(k, 16)
        return (
            1.0 + 0.1 * n(ks[12], (1, D), 1.0), 0.1 * n(ks[13], (1, D), 1.0),  # ln1 w, b
            n(ks[0], (D, D)), n(ks[1], (1, D)),                                 # q_proj
            n(ks[2], (D, D)), n(ks[3], (1, D)),                                 # k_proj
            n(ks[4], (D, D)), n(ks[5], (1, D)),                                 # v_proj
            n(ks[6], (D, D)), n(ks[7], (1, D)),                                 # out_proj
            1.0 + 0.1 * n(ks[14], (1, D), 1.0), 0.1 * n(ks[15], (1, D), 1.0),   # ln2 w, b
            n(ks[8], (D, intermediate)), n(ks[9], (1, intermediate)),           # fc1
            n(ks[10], (intermediate, D)), n(ks[11], (1, D)),                    # fc2
        )

    layer_params = [make_layer_params(k) for k in keys[:num_layers]]
    x = jax.random.normal(keys[-1], (B, S, D), jnp.float32)

    # One-time weight preprocessing (concat / scale fold / bf16 cast) — outside
    # the forward path.
    prepared = prepare_encoder_params(layer_params, num_heads=num_heads)

    # small tiles so multiple query tiles and the MLP K-reduction are exercised
    out = siglip_encoder(x, prepared, layer_norm_eps=eps, tq=8, ti=128)
    out = jax.block_until_ready(out)

    ref = _reference_encoder(x, layer_params, num_heads=num_heads, eps=eps)
    assert out.shape == (B, S, D)
    max_err = float(jnp.max(jnp.abs(out - ref)))
    # bf16 matmul operands (f32 accumulation) vs f32 reference
    assert jnp.allclose(out, ref, atol=2e-2, rtol=2e-2), max_err

    print("KERNEL_OK")
</pallas_src>

<mosaic_0001>
module attributes {stable_mosaic.version = 11 : i64} {
  func.func @_ln1_qkv_kernel(%arg0: i32, %arg1: i32, %arg2: memref<1x8x32xf32, #tpu.memory_space<vmem>>, %arg3: memref<1x32xf32, #tpu.memory_space<vmem>>, %arg4: memref<1x32xf32, #tpu.memory_space<vmem>>, %arg5: memref<32x96xbf16, #tpu.memory_space<vmem>>, %arg6: memref<1x96xf32, #tpu.memory_space<vmem>>, %arg7: memref<1x4x8x8xbf16, #tpu.memory_space<vmem>>, %arg8: memref<1x4x8x8xbf16, #tpu.memory_space<vmem>>, %arg9: memref<1x4x8x8xbf16, #tpu.memory_space<vmem>>) attributes {dimension_semantics = [#tpu.dimension_semantics<parallel>, #tpu.dimension_semantics<parallel>], iteration_bounds = array<i64: 2, 2>, scalar_prefetch = 0 : i64, scratch_operands = 0 : i64, tpu.core_type = #tpu.core_type<tc>, window_params = [{transform_indices = @transform_0, window_bounds = array<i64: 1, 8, 32>}, {pipeline_mode = #tpu.pipeline_mode<synchronous>, transform_indices = @transform_1, window_bounds = array<i64: 1, 32>}, {pipeline_mode = #tpu.pipeline_mode<synchronous>, transform_indices = @transform_2, window_bounds = array<i64: 1, 32>}, {pipeline_mode = #tpu.pipeline_mode<synchronous>, transform_indices = @transform_3, window_bounds = array<i64: 32, 96>}, {pipeline_mode = #tpu.pipeline_mode<synchronous>, transform_indices = @transform_4, window_bounds = array<i64: 1, 96>}, {transform_indices = @transform_5, window_bounds = array<i64: 1, 4, 8, 8>}, {transform_indices = @transform_6, window_bounds = array<i64: 1, 4, 8, 8>}, {transform_indices = @transform_7, window_bounds = array<i64: 1, 4, 8, 8>}]} {
    %c0 = arith.constant 0 : index
    %c0_0 = arith.constant 0 : index
    %c0_1 = arith.constant 0 : index
    %0 = vector.load %arg2[%c0, %c0_0, %c0_1] : memref<1x8x32xf32, #tpu.memory_space<vmem>>, vector<1x8x32xf32>
    %1 = vector.shape_cast %0 : vector<1x8x32xf32> to vector<8x32xf32>
    %c0_2 = arith.constant 0 : index
    %c0_3 = arith.constant 0 : index
    %2 = vector.load %arg3[%c0_2, %c0_3] : memref<1x32xf32, #tpu.memory_space<vmem>>, vector<1x32xf32>
    %c0_4 = arith.constant 0 : index
    %c0_5 = arith.constant 0 : index
    %3 = vector.load %arg4[%c0_4, %c0_5] : memref<1x32xf32, #tpu.memory_space<vmem>>, vector<1x32xf32>
    %cst = arith.constant dense<0.000000e+00> : vector<8xf32>
    %4 = vector.multi_reduction <add>, %1, %cst [1] : vector<8x32xf32> to vector<8xf32>
    %5 = vector.shape_cast %4 : vector<8xf32> to vector<8x1xf32>
    %cst_6 = arith.constant 3.200000e+01 : f32
    %6 = vector.broadcast %cst_6 : f32 to vector<8x1xf32>
    %7 = arith.divf %5, %6 : vector<8x1xf32>
    %8 = vector.broadcast %7 : vector<8x1xf32> to vector<8x32xf32>
    %9 = arith.subf %1, %8 : vector<8x32xf32>
    %10 = arith.mulf %9, %9 : vector<8x32xf32>
    %cst_7 = arith.constant dense<0.000000e+00> : vector<8xf32>
    %11 = vector.multi_reduction <add>, %10, %cst_7 [1] : vector<8x32xf32> to vector<8xf32>
    %12 = vector.shape_cast %11 : vector<8xf32> to vector<8x1xf32>
    %cst_8 = arith.constant 3.200000e+01 : f32
    %13 = vector.broadcast %cst_8 : f32 to vector<8x1xf32>
    %14 = arith.divf %12, %13 : vector<8x1xf32>
    %15 = vector.broadcast %7 : vector<8x1xf32> to vector<8x32xf32>
    %16 = arith.subf %1, %15 : vector<8x32xf32>
    %cst_9 = arith.constant 9.99999997E-7 : f32
    %17 = vector.broadcast %cst_9 : f32 to vector<8x1xf32>
    %18 = arith.addf %14, %17 : vector<8x1xf32>
    %19 = math.rsqrt %18 : vector<8x1xf32>
    %20 = vector.broadcast %19 : vector<8x1xf32> to vector<8x32xf32>
    %21 = arith.mulf %16, %20 : vector<8x32xf32>
    %22 = vector.broadcast %2 : vector<1x32xf32> to vector<8x32xf32>
    %23 = arith.mulf %21, %22 : vector<8x32xf32>
    %24 = vector.broadcast %3 : vector<1x32xf32> to vector<8x32xf32>
    %25 = arith.addf %23, %24 : vector<8x32xf32>
    %26 = arith.truncf %25 : vector<8x32xf32> to vector<8x32xbf16>
    %c0_10 = arith.constant 0 : index
    %c0_11 = arith.constant 0 : index
    %27 = vector.load %arg5[%c0_10, %c0_11] : memref<32x96xbf16, #tpu.memory_space<vmem>>, vector<32x96xbf16>
    %cst_12 = arith.constant dense<0.000000e+00> : vector<8x96xf32>
    %28 = tpu.matmul %26, %27, %cst_12 {dimension_numbers = #tpu.dot_dimension_numbers<[1], [0], [0], [1], [0, 0, 1, 1], [], []>} : vector<8x32xbf16>, vector<32x96xbf16>, vector<8x96xf32> -> vector<8x96xf32>
    %c0_13 = arith.constant 0 : index
    %c0_14 = arith.constant 0 : index
    %29 = vector.load %arg6[%c0_13, %c0_14] : memref<1x96xf32, #tpu.memory_space<vmem>>, vector<1x96xf32>
    %30 = vector.broadcast %29 : vector<1x96xf32> to vector<8x96xf32>
    %31 = arith.addf %28, %30 : vector<8x96xf32>
    %32 = vector.extract_strided_slice %31 {offsets = [0, 0], sizes = [8, 8], strides = [1, 1]} : vector<8x96xf32> to vector<8x8xf32>
    %33 = arith.truncf %32 : vector<8x8xf32> to vector<8x8xbf16>
    %c0_15 = arith.constant 0 : index
    %c0_16 = arith.constant 0 : index
    %c0_17 = arith.constant 0 : index
    %c0_18 = arith.constant 0 : index
    %34 = vector.load %arg7[%c0_15, %c0_16, %c0_17, %c0_18] : memref<1x4x8x8xbf16, #tpu.memory_space<vmem>>, vector<1x1x8x8xbf16>
    %35 = vector.shape_cast %34 : vector<1x1x8x8xbf16> to vector<8x8xbf16>
    %36 = vector.shape_cast %33 : vector<8x8xbf16> to vector<1x1x8x8xbf16>
    tpu.vector_store %arg7[%c0_15, %c0_16, %c0_17, %c0_18], %36 {strides = array<i32>} : memref<1x4x8x8xbf16, #tpu.memory_space<vmem>>, vector<1x1x8x8xbf16>,
    %37 = vector.extract_strided_slice %31 {offsets = [0, 32], sizes = [8, 8], strides = [1, 1]} : vector<8x96xf32> to vector<8x8xf32>
    %38 = arith.truncf %37 : vector<8x8xf32> to vector<8x8xbf16>
    %c0_19 = arith.constant 0 : index
    %c0_20 = arith.constant 0 : index
    %c0_21 = arith.constant 0 : index
    %c0_22 = arith.constant 0 : index
    %39 = vector.load %arg8[%c0_19, %c0_20, %c0_21, %c0_22] : memref<1x4x8x8xbf16, #tpu.memory_space<vmem>>, vector<1x1x8x8xbf16>
    %40 = vector.shape_cast %39 : vector<1x1x8x8xbf16> to vector<8x8xbf16>
    %41 = vector.shape_cast %38 : vector<8x8xbf16> to vector<1x1x8x8xbf16>
    tpu.vector_store %arg8[%c0_19, %c0_20, %c0_21, %c0_22], %41 {strides = array<i32>} : memref<1x4x8x8xbf16, #tpu.memory_space<vmem>>, vector<1x1x8x8xbf16>,
    %42 = vector.extract_strided_slice %31 {offsets = [0, 64], sizes = [8, 8], strides = [1, 1]} : vector<8x96xf32> to vector<8x8xf32>
    %43 = arith.truncf %42 : vector<8x8xf32> to vector<8x8xbf16>
    %c0_23 = arith.constant 0 : index
    %c0_24 = arith.constant 0 : index
    %c0_25 = arith.constant 0 : index
    %c0_26 = arith.constant 0 : index
    %44 = vector.load %arg9[%c0_23, %c0_24, %c0_25, %c0_26] : memref<1x4x8x8xbf16, #tpu.memory_space<vmem>>, vector<1x1x8x8xbf16>
    %45 = vector.shape_cast %44 : vector<1x1x8x8xbf16> to vector<8x8xbf16>
    %46 = vector.shape_cast %43 : vector<8x8xbf16> to vector<1x1x8x8xbf16>
    tpu.vector_store %arg9[%c0_23, %c0_24, %c0_25, %c0_26], %46 {strides = array<i32>} : memref<1x4x8x8xbf16, #tpu.memory_space<vmem>>, vector<1x1x8x8xbf16>,
    %47 = vector.extract_strided_slice %31 {offsets = [0, 8], sizes = [8, 8], strides = [1, 1]} : vector<8x96xf32> to vector<8x8xf32>
    %48 = arith.truncf %47 : vector<8x8xf32> to vector<8x8xbf16>
    %c0_27 = arith.constant 0 : index
    %c1 = arith.constant 1 : index
    %c0_28 = arith.constant 0 : index
    %c0_29 = arith.constant 0 : index
    %49 = vector.load %arg7[%c0_27, %c1, %c0_28, %c0_29] : memref<1x4x8x8xbf16, #tpu.memory_space<vmem>>, vector<1x1x8x8xbf16>
    %50 = vector.shape_cast %49 : vector<1x1x8x8xbf16> to vector<8x8xbf16>
    %51 = vector.shape_cast %48 : vector<8x8xbf16> to vector<1x1x8x8xbf16>
    tpu.vector_store %arg7[%c0_27, %c1, %c0_28, %c0_29], %51 {strides = array<i32>} : memref<1x4x8x8xbf16, #tpu.memory_space<vmem>>, vector<1x1x8x8xbf16>,
    %52 = vector.extract_strided_slice %31 {offsets = [0, 40], sizes = [8, 8], strides = [1, 1]} : vector<8x96xf32> to vector<8x8xf32>
    %53 = arith.truncf %52 : vector<8x8xf32> to vector<8x8xbf16>
    %c0_30 = arith.constant 0 : index
    %c1_31 = arith.constant 1 : index
    %c0_32 = arith.constant 0 : index
    %c0_33 = arith.constant 0 : index
    %54 = vector.load %arg8[%c0_30, %c1_31, %c0_32, %c0_33] : memref<1x4x8x8xbf16, #tpu.memory_space<vmem>>, vector<1x1x8x8xbf16>
    %55 = vector.shape_cast %54 : vector<1x1x8x8xbf16> to vector<8x8xbf16>
    %56 = vector.shape_cast %53 : vector<8x8xbf16> to vector<1x1x8x8xbf16>
    tpu.vector_store %arg8[%c0_30, %c1_31, %c0_32, %c0_33], %56 {strides = array<i32>} : memref<1x4x8x8xbf16, #tpu.memory_space<vmem>>, vector<1x1x8x8xbf16>,
    %57 = vector.extract_strided_slice %31 {offsets = [0, 72], sizes = [8, 8], strides = [1, 1]} : vector<8x96xf32> to vector<8x8xf32>
    %58 = arith.truncf %57 : vector<8x8xf32> to vector<8x8xbf16>
    %c0_34 = arith.constant 0 : index
    %c1_35 = arith.constant 1 : index
    %c0_36 = arith.constant 0 : index
    %c0_37 = arith.constant 0 : index
    %59 = vector.load %arg9[%c0_34, %c1_35, %c0_36, %c0_37] : memref<1x4x8x8xbf16, #tpu.memory_space<vmem>>, vector<1x1x8x8xbf16>
    %60 = vector.shape_cast %59 : vector<1x1x8x8xbf16> to vector<8x8xbf16>
    %61 = vector.shape_cast %58 : vector<8x8xbf16> to vector<1x1x8x8xbf16>
    tpu.vector_store %arg9[%c0_34, %c1_35, %c0_36, %c0_37], %61 {strides = array<i32>} : memref<1x4x8x8xbf16, #tpu.memory_space<vmem>>, vector<1x1x8x8xbf16>,
    %62 = vector.extract_strided_slice %31 {offsets = [0, 16], sizes = [8, 8], strides = [1, 1]} : vector<8x96xf32> to vector<8x8xf32>
    %63 = arith.truncf %62 : vector<8x8xf32> to vector<8x8xbf16>
    %c0_38 = arith.constant 0 : index
    %c2 = arith.constant 2 : index
    %c0_39 = arith.constant 0 : index
    %c0_40 = arith.constant 0 : index
    %64 = vector.load %arg7[%c0_38, %c2, %c0_39, %c0_40] : memref<1x4x8x8xbf16, #tpu.memory_space<vmem>>, vector<1x1x8x8xbf16>
    %65 = vector.shape_cast %64 : vector<1x1x8x8xbf16> to vector<8x8xbf16>
    %66 = vector.shape_cast %63 : vector<8x8xbf16> to vector<1x1x8x8xbf16>
    tpu.vector_store %arg7[%c0_38, %c2, %c0_39, %c0_40], %66 {strides = array<i32>} : memref<1x4x8x8xbf16, #tpu.memory_space<vmem>>, vector<1x1x8x8xbf16>,
    %67 = vector.extract_strided_slice %31 {offsets = [0, 48], sizes = [8, 8], strides = [1, 1]} : vector<8x96xf32> to vector<8x8xf32>
    %68 = arith.truncf %67 : vector<8x8xf32> to vector<8x8xbf16>
    %c0_41 = arith.constant 0 : index
    %c2_42 = arith.constant 2 : index
    %c0_43 = arith.constant 0 : index
    %c0_44 = arith.constant 0 : index
    %69 = vector.load %arg8[%c0_41, %c2_42, %c0_43, %c0_44] : memref<1x4x8x8xbf16, #tpu.memory_space<vmem>>, vector<1x1x8x8xbf16>
    %70 = vector.shape_cast %69 : vector<1x1x8x8xbf16> to vector<8x8xbf16>
    %71 = vector.shape_cast %68 : vector<8x8xbf16> to vector<1x1x8x8xbf16>
    tpu.vector_store %arg8[%c0_41, %c2_42, %c0_43, %c0_44], %71 {strides = array<i32>} : memref<1x4x8x8xbf16, #tpu.memory_space<vmem>>, vector<1x1x8x8xbf16>,
    %72 = vector.extract_strided_slice %31 {offsets = [0, 80], sizes = [8, 8], strides = [1, 1]} : vector<8x96xf32> to vector<8x8xf32>
    %73 = arith.truncf %72 : vector<8x8xf32> to vector<8x8xbf16>
    %c0_45 = arith.constant 0 : index
    %c2_46 = arith.constant 2 : index
    %c0_47 = arith.constant 0 : index
    %c0_48 = arith.constant 0 : index
    %74 = vector.load %arg9[%c0_45, %c2_46, %c0_47, %c0_48] : memref<1x4x8x8xbf16, #tpu.memory_space<vmem>>, vector<1x1x8x8xbf16>
    %75 = vector.shape_cast %74 : vector<1x1x8x8xbf16> to vector<8x8xbf16>
    %76 = vector.shape_cast %73 : vector<8x8xbf16> to vector<1x1x8x8xbf16>
    tpu.vector_store %arg9[%c0_45, %c2_46, %c0_47, %c0_48], %76 {strides = array<i32>} : memref<1x4x8x8xbf16, #tpu.memory_space<vmem>>, vector<1x1x8x8xbf16>,
    %77 = vector.extract_strided_slice %31 {offsets = [0, 24], sizes = [8, 8], strides = [1, 1]} : vector<8x96xf32> to vector<8x8xf32>
    %78 = arith.truncf %77 : vector<8x8xf32> to vector<8x8xbf16>
    %c0_49 = arith.constant 0 : index
    %c3 = arith.constant 3 : index
    %c0_50 = arith.constant 0 : index
    %c0_51 = arith.constant 0 : index
    %79 = vector.load %arg7[%c0_49, %c3, %c0_50, %c0_51] : memref<1x4x8x8xbf16, #tpu.memory_space<vmem>>, vector<1x1x8x8xbf16>
    %80 = vector.shape_cast %79 : vector<1x1x8x8xbf16> to vector<8x8xbf16>
    %81 = vector.shape_cast %78 : vector<8x8xbf16> to vector<1x1x8x8xbf16>
    tpu.vector_store %arg7[%c0_49, %c3, %c0_50, %c0_51], %81 {strides = array<i32>} : memref<1x4x8x8xbf16, #tpu.memory_space<vmem>>, vector<1x1x8x8xbf16>,
    %82 = vector.extract_strided_slice %31 {offsets = [0, 56], sizes = [8, 8], strides = [1, 1]} : vector<8x96xf32> to vector<8x8xf32>
    %83 = arith.truncf %82 : vector<8x8xf32> to vector<8x8xbf16>
    %c0_52 = arith.constant 0 : index
    %c3_53 = arith.constant 3 : index
    %c0_54 = arith.constant 0 : index
    %c0_55 = arith.constant 0 : index
    %84 = vector.load %arg8[%c0_52, %c3_53, %c0_54, %c0_55] : memref<1x4x8x8xbf16, #tpu.memory_space<vmem>>, vector<1x1x8x8xbf16>
    %85 = vector.shape_cast %84 : vector<1x1x8x8xbf16> to vector<8x8xbf16>
    %86 = vector.shape_cast %83 : vector<8x8xbf16> to vector<1x1x8x8xbf16>
    tpu.vector_store %arg8[%c0_52, %c3_53, %c0_54, %c0_55], %86 {strides = array<i32>} : memref<1x4x8x8xbf16, #tpu.memory_space<vmem>>, vector<1x1x8x8xbf16>,
    %87 = vector.extract_strided_slice %31 {offsets = [0, 88], sizes = [8, 8], strides = [1, 1]} : vector<8x96xf32> to vector<8x8xf32>
    %88 = arith.truncf %87 : vector<8x8xf32> to vector<8x8xbf16>
    %c0_56 = arith.constant 0 : index
    %c3_57 = arith.constant 3 : index
    %c0_58 = arith.constant 0 : index
    %c0_59 = arith.constant 0 : index
    %89 = vector.load %arg9[%c0_56, %c3_57, %c0_58, %c0_59] : memref<1x4x8x8xbf16, #tpu.memory_space<vmem>>, vector<1x1x8x8xbf16>
    %90 = vector.shape_cast %89 : vector<1x1x8x8xbf16> to vector<8x8xbf16>
    %91 = vector.shape_cast %88 : vector<8x8xbf16> to vector<1x1x8x8xbf16>
    tpu.vector_store %arg9[%c0_56, %c3_57, %c0_58, %c0_59], %91 {strides = array<i32>} : memref<1x4x8x8xbf16, #tpu.memory_space<vmem>>, vector<1x1x8x8xbf16>,
    return
  }
  func.func @transform_0(%arg0: i32, %arg1: i32) -> (i32, i32, i32) {
    %c0_i32 = arith.constant 0 : i32
    %c0_i32_0 = arith.constant 0 : i32
    return %arg0, %arg1, %c0_i32 : i32, i32, i32
  }
  func.func @transform_1(%arg0: i32, %arg1: i32) -> (i32, i32) {
    %c0_i32 = arith.constant 0 : i32
    %c0_i32_0 = arith.constant 0 : i32
    %c0_i32_1 = arith.constant 0 : i32
    return %c0_i32, %c0_i32_0 : i32, i32
  }
  func.func @transform_2(%arg0: i32, %arg1: i32) -> (i32, i32) {
    %c0_i32 = arith.constant 0 : i32
    %c0_i32_0 = arith.constant 0 : i32
    %c0_i32_1 = arith.constant 0 : i32
    return %c0_i32, %c0_i32_0 : i32, i32
  }
  func.func @transform_3(%arg0: i32, %arg1: i32) -> (i32, i32) {
    %c0_i32 = arith.constant 0 : i32
    %c0_i32_0 = arith.constant 0 : i32
    %c0_i32_1 = arith.constant 0 : i32
    return %c0_i32, %c0_i32_0 : i32, i32
  }
  func.func @transform_4(%arg0: i32, %arg1: i32) -> (i32, i32) {
    %c0_i32 = arith.constant 0 : i32
    %c0_i32_0 = arith.constant 0 : i32
    %c0_i32_1 = arith.constant 0 : i32
    return %c0_i32, %c0_i32_0 : i32, i32
  }
  func.func @transform_5(%arg0: i32, %arg1: i32) -> (i32, i32, i32, i32) {
    %c0_i32 = arith.constant 0 : i32
    %c0_i32_0 = arith.constant 0 : i32
    %c0_i32_1 = arith.constant 0 : i32
    return %arg0, %c0_i32, %arg1, %c0_i32_0 : i32, i32, i32, i32
  }
  func.func @transform_6(%arg0: i32, %arg1: i32) -> (i32, i32, i32, i32) {
    %c0_i32 = arith.constant 0 : i32
    %c0_i32_0 = arith.constant 0 : i32
    %c0_i32_1 = arith.constant 0 : i32
    return %arg0, %c0_i32, %arg1, %c0_i32_0 : i32, i32, i32, i32
  }
  func.func @transform_7(%arg0: i32, %arg1: i32) -> (i32, i32, i32, i32) {
    %c0_i32 = arith.constant 0 : i32
    %c0_i32_0 = arith.constant 0 : i32
    %c0_i32_1 = arith.constant 0 : i32
    return %arg0, %c0_i32, %arg1, %c0_i32_0 : i32, i32, i32, i32
  }
}

</mosaic_0001>

<llo_original>
// kernel: tpu_custom_call.1
$region0: #{tpu_custom_call.1}
  #allocation0 [shape = 'u32[]', space=smem, size = 0x4, offset = 0x4, fixed_abs, tag = 'smem constant byte address 0x4 - core index']
  #allocation1 [shape = 'u32[144,128]{1,0:T(1,128)}', space=vmem, size = 0x12000, scoped, tag = 'internal scratch']
  %s0 = inlined_call_operand.hbm [shape: f32[2,16,32], index: 0, kind: input, shape index: {}]
  %s1 = inlined_call_operand.vmem [shape: f32[1,32], index: 1, kind: input, shape index: {}]
  %s2 = inlined_call_operand.vmem [shape: f32[1,32], index: 2, kind: input, shape index: {}]
  %s3 = inlined_call_operand.hbm [shape: bf16[32,96], index: 3, kind: input, shape index: {}]
  %s4 = inlined_call_operand.vmem [shape: f32[1,96], index: 4, kind: input, shape index: {}]
  %s5 = inlined_call_operand.vmem [shape: bf16[2,4,16,8], index: 5, kind: output, shape index: {0}]
  %s6 = inlined_call_operand.vmem [shape: bf16[2,4,16,8], index: 6, kind: output, shape index: {1}]
  %s7 = inlined_call_operand.vmem [shape: bf16[2,4,16,8], index: 7, kind: output, shape index: {2}]
  %8 = xla_tuple %s5, %s6, %s7
  %s9 = sld [smem:[#allocation0]]
  $region188: #{tpu_custom_call.1} parent=0
    _
  %s11 = ssub.s32 1, %s9
  %s12 = scalar_select 0, %s11, %s9
  $region1: #{tpu_custom_call.1} parent=0
    #allocation2 [shape = 'u8[8192]{0}', space=vmem, size = 0x2000, scoped, tag = 'input window, operand 0']
    #allocation3 [shape = 's32[2]{0}', space=sflag, size = 0x8, scoped, tag = 'scoped memory for tpu_custom_call.1']
    #allocation4 [shape = 'u8[8192]{0}', space=vmem, size = 0x2000, scoped, tag = 'input window, operand 3, single buffered']
    #allocation5 [shape = 's32[1]{0}', space=sflag, size = 0x4, scoped, tag = 'scoped memory for tpu_custom_call.1']
    #allocation6 [shape = 'u8[16384]{0}', space=vmem, size = 0x4000, scoped, tag = 'output window, operand 0']
    #allocation7 [shape = 'u8[16384]{0}', space=vmem, size = 0x4000, scoped, tag = 'output window, operand 1']
    #allocation8 [shape = 'u8[16384]{0}', space=vmem, size = 0x4000, scoped, tag = 'output window, operand 2']
    %13 = vsyncpa [#allocation3], 0
    %s14 = scalar_lea.sflag [#allocation3], 1
    %15 = vsyncpa %s14, 0
    %16 = vsyncpa [#allocation5], 0
    loop: start=0, step=1, limit=6
    $region2: #{tpu_custom_call.1} parent=1 // loop_pre_header
      _
    $region3: #{tpu_custom_call.1} parent=1 // loop_header
      %s18 = sphi 0, %s22
      %p19 = scmp.ge.s32.totalorder %s18, 6
      %s25 = sphi 0, %s37
      %s26 = sphi 0, %s33
      %s27 = sphi 0, %s25
      %s28 = sphi 0, %s26
      %s29 = sphi 0, %s27
      %s30 = sphi 0, %s28
      %s42 = sphi 0, %s44
      %s45 = sphi 0, %s42
      %s46 = sphi 0, %s45
      %s62 = sphi 0, %s46
      %s66 = sphi 0, %s66
      %s68 = sphi 0, %s66
      %s69 = sphi 0, %s68
      %s83 = sphi 0, %s69
      %s87 = sphi 0, %s87
      %s89 = sphi 0, %s87
      %s90 = sphi 0, %s89
      %s104 = sphi 0, %s90
      %s108 = sphi 0, %s108
      %s110 = sphi 0, %s108
      %s111 = sphi 0, %s110
      %s125 = sphi 0, %s111
      %s129 = sphi 0, %s129
      %s131 = sphi 0, %s129
      %s132 = sphi 0, %s131
      %s146 = sphi 0, %s132
      %s154 = sphi 0, %s156
      %s157 = sphi 0, %s154
      %s158 = sphi 0, %s157
      %s174 = sphi 0, %s158
      %s182 = sphi 0, %s184
      %s185 = sphi 0, %s182
      %s186 = sphi 0, %s185
      %s202 = sphi 0, %s186
      %s210 = sphi 0, %s212
      %s213 = sphi 0, %s210
      %s214 = sphi 0, %s213
      %s230 = sphi 0, %s214
    $region4: #{tpu_custom_call.1} parent=1 // loop_header_branch
      %21 = sbr.rel (%p19) target = $region8
    $region5: #{tpu_custom_call.1} parent=1 // loop_body
      %s23 = ssub.s32 %s18, 1
      %s24 = ssub.s32 %s18, 2
      %s31 = sadd.s32 1, %s26
      %p32 = scmp.ge.s32.totalorder %s31, 2
      %s33 = scalar_select %p32, 0, %s31
      %s34 = sadd.s32 1, %s25
      %s35 = scalar_select %p32, %s34, %s25
      %p36 = scmp.ge.s32.totalorder %s35, 2
      %s37 = scalar_select %p36, 0, %s35
      %s38 = ssub.s32 %s25, %s37
      %s39 = ssub.s32 %s26, %s33
      %s40 = sor.u32 %s38, %s39
      %p41 = scmp.eq.s32.totalorder %s40, 0
      %s43 = sadd.s32 %s42, 1
      %s44 = scalar_select %p41, %s42, %s43
      %p47 = pneg %p41
      %p48 = scmp.eq.s32.totalorder %s18, 3
      %p49 = por %p47, %p48
      %p50 = scmp.ne.s32.totalorder %s42, %s45
      %p51 = scmp.eq.s32.totalorder %s18, 0
      %p52 = por %p50, %p51
      %p53 = scmp.ne.s32.totalorder %s42, %s45
      %p54 = scmp.eq.s32.totalorder %s23, 3
      %p55 = por %p53, %p54
      %p56 = scmp.ne.s32.totalorder %s45, %s46
      %p57 = scmp.eq.s32.totalorder %s23, 0
      %p58 = por %p56, %p57
      %p59 = scmp.ne.s32.totalorder %s45, %s46
      %p60 = scmp.eq.s32.totalorder %s24, 3
      %p61 = por %p59, %p60
      %p63 = scmp.ne.s32.totalorder %s46, %s62
      %p64 = scmp.eq.s32.totalorder %s24, 0
      %p65 = por %p63, %p64
      %s67 = sadd.s32 %s66, 1
      %p70 = scmp.eq.s32.totalorder %s18, 3
      %p71 = scmp.ne.s32.totalorder %s66, %s68
      %p72 = scmp.eq.s32.totalorder %s18, 0
      %p73 = por %p71, %p72
      %p74 = scmp.ne.s32.totalorder %s66, %s68
      %p75 = scmp.eq.s32.totalorder %s23, 3
      %p76 = por %p74, %p75
      %p77 = scmp.ne.s32.totalorder %s68, %s69
      %p78 = scmp.eq.s32.totalorder %s23, 0
      %p79 = por %p77, %p78
      %p80 = scmp.ne.s32.totalorder %s68, %s69
      %p81 = scmp.eq.s32.totalorder %s24, 3
      %p82 = por %p80, %p81
      %p84 = scmp.ne.s32.totalorder %s69, %s83
      %p85 = scmp.eq.s32.totalorder %s24, 0
      %p86 = por %p84, %p85
      %s88 = sadd.s32 %s87, 1
      %p91 = scmp.eq.s32.totalorder %s18, 3
      %p92 = scmp.ne.s32.totalorder %s87, %s89
      %p93 = scmp.eq.s32.totalorder %s18, 0
      %p94 = por %p92, %p93
      %p95 = scmp.ne.s32.totalorder %s87, %s89
      %p96 = scmp.eq.s32.totalorder %s23, 3
      %p97 = por %p95, %p96
      %p98 = scmp.ne.s32.totalorder %s89, %s90
      %p99 = scmp.eq.s32.totalorder %s23, 0
      %p100 = por %p98, %p99
      %p101 = scmp.ne.s32.totalorder %s89, %s90
      %p102 = scmp.eq.s32.totalorder %s24, 3
      %p103 = por %p101, %p102
      %p105 = scmp.ne.s32.totalorder %s90, %s104
      %p106 = scmp.eq.s32.totalorder %s24, 0
      %p107 = por %p105, %p106
      %s109 = sadd.s32 %s108, 1
      %p112 = scmp.eq.s32.totalorder %s18, 3
      %p113 = scmp.ne.s32.totalorder %s108, %s110
      %p114 = scmp.eq.s32.totalorder %s18, 0
      %p115 = por %p113, %p114
      %p116 = scmp.ne.s32.totalorder %s108, %s110
      %p117 = scmp.eq.s32.totalorder %s23, 3
      %p118 = por %p116, %p117
      %p119 = scmp.ne.s32.totalorder %s110, %s111
      %p120 = scmp.eq.s32.totalorder %s23, 0
      %p121 = por %p119, %p120
      %p122 = scmp.ne.s32.totalorder %s110, %s111
      %p123 = scmp.eq.s32.totalorder %s24, 3
      %p124 = por %p122, %p123
      %p126 = scmp.ne.s32.totalorder %s111, %s125
      %p127 = scmp.eq.s32.totalorder %s24, 0
      %p128 = por %p126, %p127
      %s130 = sadd.s32 %s129, 1
      %p133 = scmp.eq.s32.totalorder %s18, 3
      %p134 = scmp.ne.s32.totalorder %s129, %s131
      %p135 = scmp.eq.s32.totalorder %s18, 0
      %p136 = por %p134, %p135
      %p137 = scmp.ne.s32.totalorder %s129, %s131
      %p138 = scmp.eq.s32.totalorder %s23, 3
      %p139 = por %p137, %p138
      %p140 = scmp.ne.s32.totalorder %s131, %s132
      %p141 = scmp.eq.s32.totalorder %s23, 0
      %p142 = por %p140, %p141
      %p143 = scmp.ne.s32.totalorder %s131, %s132
      %p144 = scmp.eq.s32.totalorder %s24, 3
      %p145 = por %p143, %p144
      %p147 = scmp.ne.s32.totalorder %s132, %s146
      %p148 = scmp.eq.s32.totalorder %s24, 0
      %p149 = por %p147, %p148
      %s150 = ssub.s32 %s25, %s37
      %s151 = ssub.s32 %s26, %s33
      %s152 = sor.u32 %s150, %s151
      %p153 = scmp.eq.s32.totalorder %s152, 0
      %s155 = sadd.s32 %s154, 1
      %s156 = scalar_select %p153, %s154, %s155
      %p159 = pneg %p153
      %p160 = scmp.eq.s32.totalorder %s18, 3
      %p161 = por %p159, %p160
      %p162 = scmp.ne.s32.totalorder %s154, %s157
      %p163 = scmp.eq.s32.totalorder %s18, 0
      %p164 = por %p162, %p163
      %p165 = scmp.ne.s32.totalorder %s154, %s157
      %p166 = scmp.eq.s32.totalorder %s23, 3
      %p167 = por %p165, %p166
      %p168 = scmp.ne.s32.totalorder %s157, %s158
      %p169 = scmp.eq.s32.totalorder %s23, 0
      %p170 = por %p168, %p169
      %p171 = scmp.ne.s32.totalorder %s157, %s158
      %p172 = scmp.eq.s32.totalorder %s24, 3
      %p173 = por %p171, %p172
      %p175 = scmp.ne.s32.totalorder %s158, %s174
      %p176 = scmp.eq.s32.totalorder %s24, 0
      %p177 = por %p175, %p176
      %s178 = ssub.s32 %s25, %s37
      %s179 = ssub.s32 %s26, %s33
      %s180 = sor.u32 %s178, %s179
      %p181 = scmp.eq.s32.totalorder %s180, 0
      %s183 = sadd.s32 %s182, 1
      %s184 = scalar_select %p181, %s182, %s183
      %p187 = pneg %p181
      %p188 = scmp.eq.s32.totalorder %s18, 3
      %p189 = por %p187, %p188
      %p190 = scmp.ne.s32.totalorder %s182, %s185
      %p191 = scmp.eq.s32.totalorder %s18, 0
      %p192 = por %p190, %p191
      %p193 = scmp.ne.s32.totalorder %s182, %s185
      %p194 = scmp.eq.s32.totalorder %s23, 3
      %p195 = por %p193, %p194
      %p196 = scmp.ne.s32.totalorder %s185, %s186
      %p197 = scmp.eq.s32.totalorder %s23, 0
      %p198 = por %p196, %p197
      %p199 = scmp.ne.s32.totalorder %s185, %s186
      %p200 = scmp.eq.s32.totalorder %s24, 3
      %p201 = por %p199, %p200
      %p203 = scmp.ne.s32.totalorder %s186, %s202
      %p204 = scmp.eq.s32.totalorder %s24, 0
      %p205 = por %p203, %p204
      %s206 = ssub.s32 %s25, %s37
      %s207 = ssub.s32 %s26, %s33
      %s208 = sor.u32 %s206, %s207
      %p209 = scmp.eq.s32.totalorder %s208, 0
      %s211 = sadd.s32 %s210, 1
      %s212 = scalar_select %p209, %s210, %s211
      %p215 = pneg %p209
      %p216 = scmp.eq.s32.totalorder %s18, 3
      %p217 = por %p215, %p216
      %p218 = scmp.ne.s32.totalorder %s210, %s213
      %p219 = scmp.eq.s32.totalorder %s18, 0
      %p220 = por %p218, %p219
      %p221 = scmp.ne.s32.totalorder %s210, %s213
      %p222 = scmp.eq.s32.totalorder %s23, 3
      %p223 = por %p221, %p222
      %p224 = scmp.ne.s32.totalorder %s213, %s214
      %p225 = scmp.eq.s32.totalorder %s23, 0
      %p226 = por %p224, %p225
      %p227 = scmp.ne.s32.totalorder %s213, %s214
      %p228 = scmp.eq.s32.totalorder %s24, 3
      %p229 = por %p227, %p228
      %p231 = scmp.ne.s32.totalorder %s214, %s230
      %p232 = scmp.eq.s32.totalorder %s24, 0
      %p233 = por %p231, %p232
      %p234 = scmp.le.s32.totalorder 1, %s18
      %p235 = scmp.lt.s32.totalorder %s18, 5
      %p236 = pnand %p234, %p235
      %p237 = pneg %p236
      // Predicated region
      $region9: #{tpu_custom_call.1} parent=5 // pred_check
        _
      $region10: #{tpu_custom_call.1} parent=5 // pred_check_branch
        %239 = sbr.rel (%p236) target = $region12
      $region11: #{tpu_custom_call.1} parent=5 // pred_region
        %s240 = ssub.s32 %s18, 1
        // Predicated region
        $region13: #{tpu_custom_call.1} parent=11 // pred_check
          %p241 = pneg %p79
        $region14: #{tpu_custom_call.1} parent=11 // pred_check_branch
          %243 = sbr.rel (%p241) target = $region16
        $region15: #{tpu_custom_call.1} parent=11 // pred_region
          _
        $region16: #{tpu_custom_call.1} parent=11 // pred_fallthru
          _
        // Predicated region
        $region17: #{tpu_custom_call.1} parent=11 // pred_check
          %p244 = pneg %p100
        $region18: #{tpu_custom_call.1} parent=11 // pred_check_branch
          %246 = sbr.rel (%p244) target = $region20
        $region19: #{tpu_custom_call.1} parent=11 // pred_region
          _
        $region20: #{tpu_custom_call.1} parent=11 // pred_fallthru
          _
        // Predicated region
        $region21: #{tpu_custom_call.1} parent=11 // pred_check
          %p247 = pneg %p121
        $region22: #{tpu_custom_call.1} parent=11 // pred_check_branch
          %249 = sbr.rel (%p247) target = $region24
        $region23: #{tpu_custom_call.1} parent=11 // pred_region
          %s251 = ssub.s32 256, 256
          %252 = vsyncadd [#allocation5], %s251
          %s253 = sshll.u32 [#allocation4], 4
          %s254 = int_to_ptr.vmem [resolvable:$true] %s253
          %259 = dma.hbm_to_vmem [thread:$0]  %s3, 256, %s254, [#allocation5], 64, 64, 4
        $region24: #{tpu_custom_call.1} parent=11 // pred_fallthru
          _
        // Predicated region
        $region25: #{tpu_custom_call.1} parent=11 // pred_check
          %p260 = pneg %p142
        $region26: #{tpu_custom_call.1} parent=11 // pred_check_branch
          %262 = sbr.rel (%p260) target = $region28
        $region27: #{tpu_custom_call.1} parent=11 // pred_region
          _
        $region28: #{tpu_custom_call.1} parent=11 // pred_fallthru
          _
      $region12: #{tpu_custom_call.1} parent=5 // pred_fallthru
        _
      %p263 = scmp.lt.s32.totalorder %s18, 4
      // Predicated region
      $region29: #{tpu_custom_call.1} parent=5 // pred_check
        %p264 = pneg %p263
      $region30: #{tpu_custom_call.1} parent=5 // pred_check_branch
        %266 = sbr.rel (%p264) target = $region32
      $region31: #{tpu_custom_call.1} parent=5 // pred_region
        // Predicated region
        $region33: #{tpu_custom_call.1} parent=31 // pred_check
          %p267 = pneg %p52
        $region34: #{tpu_custom_call.1} parent=31 // pred_check_branch
          %269 = sbr.rel (%p267) target = $region36
        $region35: #{tpu_custom_call.1} parent=31 // pred_region
          %s270 = sand.u32 %s42, 1
          %s271 = scalar_lea.sflag [#allocation3], %s270
          %s272 = sand.u32 %s42, 1
          %s273 = smul.addr %s272, 8
          %s274 = scalar_lea.vmem [#allocation2], %s273
          %s276 = ssub.s32 128, 128
          %277 = vsyncadd %s271, %s276
          %s278 = smul.addr %s25, 2
          %s279 = sadd.s32 %s26, %s278
          %s280 = smul.addr %s279, 128
          %s281 = scalar_lea.hbm %s0, %s280
          %s283 = sshll.u32 %s274, 4
          %s284 = int_to_ptr.vmem [resolvable:$true] %s283
          %286 = dma.hbm_to_vmem [thread:$0]  %s281, 128, %s284, %s271
        $region36: #{tpu_custom_call.1} parent=31 // pred_fallthru
          _
      $region32: #{tpu_custom_call.1} parent=5 // pred_fallthru
        _
      %p287 = scmp.le.s32.totalorder 1, %s18
      %p288 = scmp.lt.s32.totalorder %s18, 5
      %p289 = pnand %p287, %p288
      %p290 = pneg %p289
      // Predicated region
      $region37: #{tpu_custom_call.1} parent=5 // pred_check
        _
      $region38: #{tpu_custom_call.1} parent=5 // pred_check_branch
        %292 = sbr.rel (%p289) target = $region40
      $region39: #{tpu_custom_call.1} parent=5 // pred_region
        %s293 = ssub.s32 %s18, 1
        %s294 = sand.u32 %s45, 1
        %s295 = scalar_lea.sflag [#allocation3], %s294
        %s296 = sand.u32 %s45, 1
        %s297 = smul.addr %s296, 8
        %s298 = scalar_lea.vmem [#allocation2], %s297
        // Predicated region
        $region41: #{tpu_custom_call.1} parent=39 // pred_check
          %p299 = pneg %p58
        $region42: #{tpu_custom_call.1} parent=39 // pred_check_branch
          %301 = sbr.rel (%p299) target = $region44
        $region43: #{tpu_custom_call.1} parent=39 // pred_region
          %302 = dma.done %s295, 128
        $region44: #{tpu_custom_call.1} parent=39 // pred_fallthru
          _
        // Predicated region
        $region45: #{tpu_custom_call.1} parent=39 // pred_check
          %p303 = pneg %p121
        $region46: #{tpu_custom_call.1} parent=39 // pred_check_branch
          %305 = sbr.rel (%p303) target = $region48
        $region47: #{tpu_custom_call.1} parent=39 // pred_region
          %306 = dma.done [#allocation5], 256
        $region48: #{tpu_custom_call.1} parent=39 // pred_fallthru
          _
        %s307 = sand.u32 %s45, 1
        %s308 = scalar_lea.sflag [#allocation3], %s307
        %s309 = sand.u32 %s45, 1
        %s310 = smul.addr %s309, 8
        %s311 = scalar_lea.vmem [#allocation2], %s310
        %p312 = pneg %p58
        %p313 = pneg %p55
        %p314 = pneg %p79
        %p315 = pneg %p76
        %p316 = pneg %p100
        %p317 = pneg %p97
        %p318 = pneg %p121
        %p319 = pneg %p118
        %p320 = pneg %p142
        %p321 = pneg %p139
        %p322 = pneg %p170
        %p323 = pneg %p167
        %s324 = sand.u32 %s157, 1
        %s325 = sand.u32 %s157, 1
        %s326 = smul.addr %s325, 16
        %s327 = scalar_lea.vmem [#allocation6], %s326
        %p328 = pneg %p198
        %p329 = pneg %p195
        %s330 = sand.u32 %s185, 1
        %s331 = sand.u32 %s185, 1
        %s332 = smul.addr %s331, 16
        %s333 = scalar_lea.vmem [#allocation7], %s332
        %p334 = pneg %p226
        %p335 = pneg %p223
        %s336 = sand.u32 %s213, 1
        %s337 = sand.u32 %s213, 1
        %s338 = smul.addr %s337, 16
        %s339 = scalar_lea.vmem [#allocation8], %s338
        %v341 = vld [vmem:[%s298] sm:$0xff]
        %v342 = vld [vmem:[%s1] sm:$0x1]
        %v343 = vld [vmem:[%s2] sm:$0x1]
        %vm344 = vcmask 261120
        %v345 = vsel %vm344, %v341, 0.0
        %346 = vadd.xlane.f32.xlu0 %v345
        %v347 = vpop.xlane.xlu0 %346
        %v348 = vrcp.pop 32.0
        %v349 = vmul.f32 %v347, %v348
        %v350 = vsub.f32 %v341, %v349
        %v351 = vmul.f32 %v350, %v350
        %v352 = vsel %vm344, %v351, 0.0
        %353 = vadd.xlane.f32.xlu0 %v352
        %v354 = vpop.xlane.xlu0 %353
        %v355 = vmul.f32 %v354, %v348
        %v356 = vadd.f32 %v355, 1e-06
        %v357 = vrsqrt.pop %v356
        %v358 = vmul.f32 %v350, %v357
        %v360 = vlaneseq
        %v361 = vshrl.u32 %v360, 7
        %v362 = vsub.s32 0, %v361
        %v363 = vrot.slane %v342, %v362
        %v365 = vmul.f32 %v358, %v363
        %v367 = vlaneseq
        %v368 = vshrl.u32 %v367, 7
        %v369 = vsub.s32 0, %v368
        %v370 = vrot.slane %v343, %v369
        %v372 = vadd.f32 %v365, %v370
        %v373 = vpack.c.bf16 %v372, %v372
        %v374 = vld [vmem:[#allocation4] sm:$0xf]
        %v375 = vld [vmem:[#allocation4 + $0x4] sm:$0xf]
        %v376 = vld [vmem:[#allocation4 + $0x8] sm:$0xf]
        %v377 = vld [vmem:[#allocation4 + $0xc] sm:$0xf]
        %v378 = vld [vmem:[%s4] sm:$0x1]
        %v380 = vlaneseq
        %v381 = vshrl.u32 %v380, 7
        %v382 = vsub.s32 0, %v381
        %v383 = vrot.slane %v378, %v382
        %v389 = vunpack.c.l.b16 %v374
        %v390 = vunpack.c.l.b16 %v375
        %v391 = vunpack.c.l.b16 %v376
        %v392 = vunpack.c.l.b16 %v377
        %v393 = vpack.c.b16 %v390, %v389
        %v394 = vpack.c.b16 %v392, %v391
        %v398 = vsel %vm344, %v373, 0
        %400 = vmatprep.subr.bf16.mxu0 0
        %401 = vmatpush1.bf16.msra.mxu0 %v393
        %402 = vmatprep.subr.bf16.mxu0 0
        %403 = vmatpush1.bf16.msra.mxu0 %v394
        %404 = vmatprep.subr.bf16.mxu0 0
        %405 = vmatpush1.bf16.msra.mxu0 0
        %406 = vmatprep.subr.bf16.mxu0 0
        %407 = vmatpush1.bf16.msra.mxu0 0
        %408 = vmatprep.subr.bf16.mxu0 0
        %409 = vmatpush1.bf16.msra.mxu0 0
        %410 = vmatprep.subr.bf16.mxu0 0
        %411 = vmatpush1.bf16.msra.mxu0 0
        %412 = vmatprep.subr.bf16.mxu0 0
        %413 = vmatpush1.bf16.msra.mxu0 0
        %414 = vmatprep.subr.bf16.mxu0 0
        %415 = vmatpush1.bf16.msra.mxu0 0
        %416 = vmatprep.subr.bf16.mxu0 0
        %417 = vmatpush1.bf16.msra.mxu0 0
        %418 = vmatprep.subr.bf16.mxu0 0
        %419 = vmatpush1.bf16.msra.mxu0 0
        %420 = vmatprep.subr.bf16.mxu0 0
        %421 = vmatpush1.bf16.msra.mxu0 0
        %422 = vmatprep.subr.bf16.mxu0 0
        %423 = vmatpush1.bf16.msra.mxu0 0
        %424 = vmatprep.subr.bf16.mxu0 0
        %425 = vmatpush1.bf16.msra.mxu0 0
        %426 = vmatprep.subr.bf16.mxu0 0
        %427 = vmatpush1.bf16.msra.mxu0 0
        %428 = vmatprep.subr.bf16.mxu0 0
        %429 = vmatpush1.bf16.msra.mxu0 0
        %430 = vmatprep.subr.bf16.mxu0 0
        %431 = vmatpush1.bf16.msra.mxu0 0
        %432 = vmatprep.mubr.bf16.mxu0 0
        %433 = vmatmul.mubr.bf16.gmra.mrb[0].mxu0 %v398
        %v434 = vpop.f32.mrb[0].mxu0
        %v435 = vadd.f32 %v383, %v434
        %v436 = vpop.f32.mrb[0].mxu0
        %v437 = vpop.f32.mrb[0].mxu0
        %v438 = vpop.f32.mrb[0].mxu0
        %439 = vdwg.mxu0
        %v440 = vpack.c.bf16 %v435, %v435
        %vm441 = vcmask 60416
        %442 = vst.msk [vmem:[%s327] sm:$0xf] %vm441, %v440
        %v444 = vunpack.c.l.b16 %v440
        %v445 = vpack.c.b16 %v444, %v444
        %446 = vrot.lane.b32.xlu0 %v445, 96
        %v447 = vpop.permute.xlu0 %446
        %449 = vst.msk [vmem:[%s333] sm:$0xf] %vm441, %v447
        %450 = vrot.lane.b32.xlu0 %v445, 64
        %v451 = vpop.permute.xlu0 %450
        %453 = vst.msk [vmem:[%s339] sm:$0xf] %vm441, %v451
        %454 = vrot.lane.b32.xlu0 %v445, 120
        %v455 = vpop.permute.xlu0 %454
        %s457 = scalar_lea.vmem %s327, 4 [#allocation6]
        %458 = vst.msk [vmem:[%s457] sm:$0xf] %vm441, %v455
        %459 = vrot.lane.b32.xlu0 %v445, 88
        %v460 = vpop.permute.xlu0 %459
        %s462 = scalar_lea.vmem %s333, 4 [#allocation7]
        %463 = vst.msk [vmem:[%s462] sm:$0xf] %vm441, %v460
        %464 = vrot.lane.b32.xlu0 %v445, 56
        %v465 = vpop.permute.xlu0 %464
        %s467 = scalar_lea.vmem %s339, 4 [#allocation8]
        %468 = vst.msk [vmem:[%s467] sm:$0xf] %vm441, %v465
        %469 = vrot.lane.b32.xlu0 %v445, 112
        %v470 = vpop.permute.xlu0 %469
        %s472 = scalar_lea.vmem %s327, 8 [#allocation6]
        %473 = vst.msk [vmem:[%s472] sm:$0xf] %vm441, %v470
        %474 = vrot.lane.b32.xlu0 %v445, 80
        %v475 = vpop.permute.xlu0 %474
        %s477 = scalar_lea.vmem %s333, 8 [#allocation7]
        %478 = vst.msk [vmem:[%s477] sm:$0xf] %vm441, %v475
        %479 = vrot.lane.b32.xlu0 %v445, 48
        %v480 = vpop.permute.xlu0 %479
        %s482 = scalar_lea.vmem %s339, 8 [#allocation8]
        %483 = vst.msk [vmem:[%s482] sm:$0xf] %vm441, %v480
        %484 = vrot.lane.b32.xlu0 %v445, 104
        %v485 = vpop.permute.xlu0 %484
        %s487 = scalar_lea.vmem %s327, 12 [#allocation6]
        %488 = vst.msk [vmem:[%s487] sm:$0xf] %vm441, %v485
        %489 = vrot.lane.b32.xlu0 %v445, 72
        %v490 = vpop.permute.xlu0 %489
        %s492 = scalar_lea.vmem %s333, 12 [#allocation7]
        %493 = vst.msk [vmem:[%s492] sm:$0xf] %vm441, %v490
        %494 = vrot.lane.b32.xlu0 %v445, 40
        %v495 = vpop.permute.xlu0 %494
        %s497 = scalar_lea.vmem %s339, 12 [#allocation8]
        %498 = vst.msk [vmem:[%s497] sm:$0xf] %vm441, %v495
        %s499 = sand.u32 %s157, 1
        %s500 = sand.u32 %s157, 1
        %s501 = smul.addr %s500, 16
        %s502 = scalar_lea.vmem [#allocation6], %s501
        %s503 = sand.u32 %s185, 1
        %s504 = sand.u32 %s185, 1
        %s505 = smul.addr %s504, 16
        %s506 = scalar_lea.vmem [#allocation7], %s505
        %s507 = sand.u32 %s213, 1
        %s508 = sand.u32 %s213, 1
        %s509 = smul.addr %s508, 16
        %s510 = scalar_lea.vmem [#allocation8], %s509
        // Predicated region
        $region49: #{tpu_custom_call.1} parent=39 // pred_check
          %p511 = pneg %p167
        $region50: #{tpu_custom_call.1} parent=39 // pred_check_branch
          %513 = sbr.rel (%p511) target = $region52
        $region51: #{tpu_custom_call.1} parent=39 // pred_region
          %s514 = smul.addr %s27, 8
          %s515 = sadd.s32 %s28, %s514
          %s516 = smul.addr %s515, 4
          %s517 = scalar_lea.vmem %s5, %s516
          // Predicated region
          $region53: #{tpu_custom_call.1} parent=51 // pred_check
            _
          $region54: #{tpu_custom_call.1} parent=51 // pred_check_branch
            %519 = sbr.rel (0) target = $region56
          $region55: #{tpu_custom_call.1} parent=51 // pred_region
            // Predicated region
            $region57: #{tpu_custom_call.1} parent=55 // pred_check
              _
            $region58: #{tpu_custom_call.1} parent=55 // pred_check_branch
              %521 = sbr.rel target = $region60
            $region59: #{tpu_custom_call.1} parent=55 // pred_region
              // Predicated region
              $region72: #{tpu_custom_call.1} parent=59 // pred_check
                _
              $region73: #{tpu_custom_call.1} parent=59 // pred_check_branch
                %542 = sbr.rel (0) target = $region75
              $region74: #{tpu_custom_call.1} parent=59 // pred_region
                loop: start=0, step=1, limit=1
                $region76: #{tpu_custom_call.1} parent=74 // loop_pre_header
                  _
                $region77: #{tpu_custom_call.1} parent=74 // loop_header
                  %s544 = sphi 0, %s548
                  %p545 = scmp.ge.s32.totalorder %s544, 1
                  %s549 = sphi %s502, %s502
                  %s550 = sphi %s517, %s517
                $region78: #{tpu_custom_call.1} parent=74 // loop_header_branch
                  %547 = sbr.rel (%p545) target = $region82
                $region79: #{tpu_custom_call.1} parent=74 // loop_body
                  _
                $region80: #{tpu_custom_call.1} parent=74 // loop_footer
                  %s548 = sadd.s32 1, %s544
                $region81: #{tpu_custom_call.1} parent=74 // loop_footer_branch
                  %543 = sbr.rel target = $region77
                $region82: #{tpu_custom_call.1} parent=74 // loop_exit
                  _
                loop: start=0, step=1, limit=1
                $region83: #{tpu_custom_call.1} parent=74 // loop_pre_header
                  _
                $region84: #{tpu_custom_call.1} parent=74 // loop_header
                  %s553 = sphi 0, %s557
                  %p554 = scmp.ge.s32.totalorder %s553, 1
                  %s558 = sphi %s502, %s502
                  %s559 = sphi %s517, %s517
                $region85: #{tpu_custom_call.1} parent=74 // loop_header_branch
                  %556 = sbr.rel (%p554) target = $region89
                $region86: #{tpu_custom_call.1} parent=74 // loop_body
                  %v560 = vld [vmem:[%s558] sm:$0xf]
                  %561 = vst [vmem:[%s559] sm:$0xf] %v560
                  %v562 = vld [vmem:[%s558 + $0x4] sm:$0xf]
                  %563 = vst [vmem:[%s559 + $0x8] sm:$0xf] %v562
                  %v564 = vld [vmem:[%s558 + $0x8] sm:$0xf]
                  %565 = vst [vmem:[%s559 + $0x10] sm:$0xf] %v564
                  %v566 = vld [vmem:[%s558 + $0xc] sm:$0xf]
                  %567 = vst [vmem:[%s559 + $0x18] sm:$0xf] %v566
                $region87: #{tpu_custom_call.1} parent=74 // loop_footer
                  %s557 = sadd.s32 1, %s553
                $region88: #{tpu_custom_call.1} parent=74 // loop_footer_branch
                  %552 = sbr.rel target = $region84
                $region89: #{tpu_custom_call.1} parent=74 // loop_exit
                  _
              $region75: #{tpu_custom_call.1} parent=59 // pred_fallthru
                _
            $region60: #{tpu_custom_call.1} parent=55 // pred_fallthru
              _
            // Predicated region
            $region61: #{tpu_custom_call.1} parent=55 // pred_check
              _
            $region62: #{tpu_custom_call.1} parent=55 // pred_check_branch
              %523 = sbr.rel (0) target = $region64
            $region63: #{tpu_custom_call.1} parent=55 // pred_region
              loop: start=0, step=1, limit=1
              $region65: #{tpu_custom_call.1} parent=63 // loop_pre_header
                _
              $region66: #{tpu_custom_call.1} parent=63 // loop_header
                %s526 = sphi 0, %s530
                %p527 = scmp.ge.s32.totalorder %s526, 1
                %s531 = sphi %s502, %s502
                %s532 = sphi %s517, %s517
              $region67: #{tpu_custom_call.1} parent=63 // loop_header_branch
                %529 = sbr.rel (%p527) target = $region71
              $region68: #{tpu_custom_call.1} parent=63 // loop_body
                %v533 = vld [vmem:[%s531] sm:$0xf]
                %534 = vst [vmem:[%s532] sm:$0xf] %v533
                %v535 = vld [vmem:[%s531 + $0x4] sm:$0xf]
                %536 = vst [vmem:[%s532 + $0x8] sm:$0xf] %v535
                %v537 = vld [vmem:[%s531 + $0x8] sm:$0xf]
                %538 = vst [vmem:[%s532 + $0x10] sm:$0xf] %v537
                %v539 = vld [vmem:[%s531 + $0xc] sm:$0xf]
                %540 = vst [vmem:[%s532 + $0x18] sm:$0xf] %v539
              $region69: #{tpu_custom_call.1} parent=63 // loop_footer
                %s530 = sadd.s32 1, %s526
              $region70: #{tpu_custom_call.1} parent=63 // loop_footer_branch
                %525 = sbr.rel target = $region66
              $region71: #{tpu_custom_call.1} parent=63 // loop_exit
                _
            $region64: #{tpu_custom_call.1} parent=55 // pred_fallthru
              _
          $region56: #{tpu_custom_call.1} parent=51 // pred_fallthru
            _
          %568 = vnop
        $region52: #{tpu_custom_call.1} parent=39 // pred_fallthru
          _
        // Predicated region
        $region90: #{tpu_custom_call.1} parent=39 // pred_check
          %p569 = pneg %p195
        $region91: #{tpu_custom_call.1} parent=39 // pred_check_branch
          %571 = sbr.rel (%p569) target = $region93
        $region92: #{tpu_custom_call.1} parent=39 // pred_region
          %s572 = smul.addr %s27, 8
          %s573 = sadd.s32 %s28, %s572
          %s574 = smul.addr %s573, 4
          %s575 = scalar_lea.vmem %s6, %s574
          // Predicated region
          $region94: #{tpu_custom_call.1} parent=92 // pred_check
            _
          $region95: #{tpu_custom_call.1} parent=92 // pred_check_branch
            %577 = sbr.rel (0) target = $region97
          $region96: #{tpu_custom_call.1} parent=92 // pred_region
            // Predicated region
            $region98: #{tpu_custom_call.1} parent=96 // pred_check
              _
            $region99: #{tpu_custom_call.1} parent=96 // pred_check_branch
              %579 = sbr.rel target = $region101
            $region100: #{tpu_custom_call.1} parent=96 // pred_region
              // Predicated region
              $region113: #{tpu_custom_call.1} parent=100 // pred_check
                _
              $region114: #{tpu_custom_call.1} parent=100 // pred_check_branch
                %600 = sbr.rel (0) target = $region116
              $region115: #{tpu_custom_call.1} parent=100 // pred_region
                loop: start=0, step=1, limit=1
                $region117: #{tpu_custom_call.1} parent=115 // loop_pre_header
                  _
                $region118: #{tpu_custom_call.1} parent=115 // loop_header
                  %s602 = sphi 0, %s606
                  %p603 = scmp.ge.s32.totalorder %s602, 1
                  %s607 = sphi %s506, %s506
                  %s608 = sphi %s575, %s575
                $region119: #{tpu_custom_call.1} parent=115 // loop_header_branch
                  %605 = sbr.rel (%p603) target = $region123
                $region120: #{tpu_custom_call.1} parent=115 // loop_body
                  _
                $region121: #{tpu_custom_call.1} parent=115 // loop_footer
                  %s606 = sadd.s32 1, %s602
                $region122: #{tpu_custom_call.1} parent=115 // loop_footer_branch
                  %601 = sbr.rel target = $region118
                $region123: #{tpu_custom_call.1} parent=115 // loop_exit
                  _
                loop: start=0, step=1, limit=1
                $region124: #{tpu_custom_call.1} parent=115 // loop_pre_header
                  _
                $region125: #{tpu_custom_call.1} parent=115 // loop_header
                  %s611 = sphi 0, %s615
                  %p612 = scmp.ge.s32.totalorder %s611, 1
                  %s616 = sphi %s506, %s506
                  %s617 = sphi %s575, %s575
                $region126: #{tpu_custom_call.1} parent=115 // loop_header_branch
                  %614 = sbr.rel (%p612) target = $region130
                $region127: #{tpu_custom_call.1} parent=115 // loop_body
                  %v618 = vld [vmem:[%s616] sm:$0xf]
                  %619 = vst [vmem:[%s617] sm:$0xf] %v618
                  %v620 = vld [vmem:[%s616 + $0x4] sm:$0xf]
                  %621 = vst [vmem:[%s617 + $0x8] sm:$0xf] %v620
                  %v622 = vld [vmem:[%s616 + $0x8] sm:$0xf]
                  %623 = vst [vmem:[%s617 + $0x10] sm:$0xf] %v622
                  %v624 = vld [vmem:[%s616 + $0xc] sm:$0xf]
                  %625 = vst [vmem:[%s617 + $0x18] sm:$0xf] %v624
                $region128: #{tpu_custom_call.1} parent=115 // loop_footer
                  %s615 = sadd.s32 1, %s611
                $region129: #{tpu_custom_call.1} parent=115 // loop_footer_branch
                  %610 = sbr.rel target = $region125
                $region130: #{tpu_custom_call.1} parent=115 // loop_exit
                  _
              $region116: #{tpu_custom_call.1} parent=100 // pred_fallthru
                _
            $region101: #{tpu_custom_call.1} parent=96 // pred_fallthru
              _
            // Predicated region
            $region102: #{tpu_custom_call.1} parent=96 // pred_check
              _
            $region103: #{tpu_custom_call.1} parent=96 // pred_check_branch
              %581 = sbr.rel (0) target = $region105
            $region104: #{tpu_custom_call.1} parent=96 // pred_region
              loop: start=0, step=1, limit=1
              $region106: #{tpu_custom_call.1} parent=104 // loop_pre_header
                _
              $region107: #{tpu_custom_call.1} parent=104 // loop_header
                %s584 = sphi 0, %s588
                %p585 = scmp.ge.s32.totalorder %s584, 1
                %s589 = sphi %s506, %s506
                %s590 = sphi %s575, %s575
              $region108: #{tpu_custom_call.1} parent=104 // loop_header_branch
                %587 = sbr.rel (%p585) target = $region112
              $region109: #{tpu_custom_call.1} parent=104 // loop_body
                %v591 = vld [vmem:[%s589] sm:$0xf]
                %592 = vst [vmem:[%s590] sm:$0xf] %v591
                %v593 = vld [vmem:[%s589 + $0x4] sm:$0xf]
                %594 = vst [vmem:[%s590 + $0x8] sm:$0xf] %v593
                %v595 = vld [vmem:[%s589 + $0x8] sm:$0xf]
                %596 = vst [vmem:[%s590 + $0x10] sm:$0xf] %v595
                %v597 = vld [vmem:[%s589 + $0xc] sm:$0xf]
                %598 = vst [vmem:[%s590 + $0x18] sm:$0xf] %v597
              $region110: #{tpu_custom_call.1} parent=104 // loop_footer
                %s588 = sadd.s32 1, %s584
              $region111: #{tpu_custom_call.1} parent=104 // loop_footer_branch
                %583 = sbr.rel target = $region107
              $region112: #{tpu_custom_call.1} parent=104 // loop_exit
                _
            $region105: #{tpu_custom_call.1} parent=96 // pred_fallthru
              _
          $region97: #{tpu_custom_call.1} parent=92 // pred_fallthru
            _
          %626 = vnop
        $region93: #{tpu_custom_call.1} parent=39 // pred_fallthru
          _
        // Predicated region
        $region131: #{tpu_custom_call.1} parent=39 // pred_check
          %p627 = pneg %p223
        $region132: #{tpu_custom_call.1} parent=39 // pred_check_branch
          %629 = sbr.rel (%p627) target = $region134
        $region133: #{tpu_custom_call.1} parent=39 // pred_region
          %s630 = smul.addr %s27, 8
          %s631 = sadd.s32 %s28, %s630
          %s632 = smul.addr %s631, 4
          %s633 = scalar_lea.vmem %s7, %s632
          // Predicated region
          $region135: #{tpu_custom_call.1} parent=133 // pred_check
            _
          $region136: #{tpu_custom_call.1} parent=133 // pred_check_branch
            %635 = sbr.rel (0) target = $region138
          $region137: #{tpu_custom_call.1} parent=133 // pred_region
            // Predicated region
            $region139: #{tpu_custom_call.1} parent=137 // pred_check
              _
            $region140: #{tpu_custom_call.1} parent=137 // pred_check_branch
              %637 = sbr.rel target = $region142
            $region141: #{tpu_custom_call.1} parent=137 // pred_region
              // Predicated region
              $region154: #{tpu_custom_call.1} parent=141 // pred_check
                _
              $region155: #{tpu_custom_call.1} parent=141 // pred_check_branch
                %658 = sbr.rel (0) target = $region157
              $region156: #{tpu_custom_call.1} parent=141 // pred_region
                loop: start=0, step=1, limit=1
                $region158: #{tpu_custom_call.1} parent=156 // loop_pre_header
                  _
                $region159: #{tpu_custom_call.1} parent=156 // loop_header
                  %s660 = sphi 0, %s664
                  %p661 = scmp.ge.s32.totalorder %s660, 1
                  %s665 = sphi %s510, %s510
                  %s666 = sphi %s633, %s633
                $region160: #{tpu_custom_call.1} parent=156 // loop_header_branch
                  %663 = sbr.rel (%p661) target = $region164
                $region161: #{tpu_custom_call.1} parent=156 // loop_body
                  _
                $region162: #{tpu_custom_call.1} parent=156 // loop_footer
                  %s664 = sadd.s32 1, %s660
                $region163: #{tpu_custom_call.1} parent=156 // loop_footer_branch
                  %659 = sbr.rel target = $region159
                $region164: #{tpu_custom_call.1} parent=156 // loop_exit
                  _
                loop: start=0, step=1, limit=1
                $region165: #{tpu_custom_call.1} parent=156 // loop_pre_header
                  _
                $region166: #{tpu_custom_call.1} parent=156 // loop_header
                  %s669 = sphi 0, %s673
                  %p670 = scmp.ge.s32.totalorder %s669, 1
                  %s674 = sphi %s510, %s510
                  %s675 = sphi %s633, %s633
                $region167: #{tpu_custom_call.1} parent=156 // loop_header_branch
                  %672 = sbr.rel (%p670) target = $region171
                $region168: #{tpu_custom_call.1} parent=156 // loop_body
                  %v676 = vld [vmem:[%s674] sm:$0xf]
                  %677 = vst [vmem:[%s675] sm:$0xf] %v676
                  %v678 = vld [vmem:[%s674 + $0x4] sm:$0xf]
                  %679 = vst [vmem:[%s675 + $0x8] sm:$0xf] %v678
                  %v680 = vld [vmem:[%s674 + $0x8] sm:$0xf]
                  %681 = vst [vmem:[%s675 + $0x10] sm:$0xf] %v680
                  %v682 = vld [vmem:[%s674 + $0xc] sm:$0xf]
                  %683 = vst [vmem:[%s675 + $0x18] sm:$0xf] %v682
                $region169: #{tpu_custom_call.1} parent=156 // loop_footer
                  %s673 = sadd.s32 1, %s669
                $region170: #{tpu_custom_call.1} parent=156 // loop_footer_branch
                  %668 = sbr.rel target = $region166
                $region171: #{tpu_custom_call.1} parent=156 // loop_exit
                  _
              $region157: #{tpu_custom_call.1} parent=141 // pred_fallthru
                _
            $region142: #{tpu_custom_call.1} parent=137 // pred_fallthru
              _
            // Predicated region
            $region143: #{tpu_custom_call.1} parent=137 // pred_check
              _
            $region144: #{tpu_custom_call.1} parent=137 // pred_check_branch
              %639 = sbr.rel (0) target = $region146
            $region145: #{tpu_custom_call.1} parent=137 // pred_region
              loop: start=0, step=1, limit=1
              $region147: #{tpu_custom_call.1} parent=145 // loop_pre_header
                _
              $region148: #{tpu_custom_call.1} parent=145 // loop_header
                %s642 = sphi 0, %s646
                %p643 = scmp.ge.s32.totalorder %s642, 1
                %s647 = sphi %s510, %s510
                %s648 = sphi %s633, %s633
              $region149: #{tpu_custom_call.1} parent=145 // loop_header_branch
                %645 = sbr.rel (%p643) target = $region153
              $region150: #{tpu_custom_call.1} parent=145 // loop_body
                %v649 = vld [vmem:[%s647] sm:$0xf]
                %650 = vst [vmem:[%s648] sm:$0xf] %v649
                %v651 = vld [vmem:[%s647 + $0x4] sm:$0xf]
                %652 = vst [vmem:[%s648 + $0x8] sm:$0xf] %v651
                %v653 = vld [vmem:[%s647 + $0x8] sm:$0xf]
                %654 = vst [vmem:[%s648 + $0x10] sm:$0xf] %v653
                %v655 = vld [vmem:[%s647 + $0xc] sm:$0xf]
                %656 = vst [vmem:[%s648 + $0x18] sm:$0xf] %v655
              $region151: #{tpu_custom_call.1} parent=145 // loop_footer
                %s646 = sadd.s32 1, %s642
              $region152: #{tpu_custom_call.1} parent=145 // loop_footer_branch
                %641 = sbr.rel target = $region148
              $region153: #{tpu_custom_call.1} parent=145 // loop_exit
                _
            $region146: #{tpu_custom_call.1} parent=137 // pred_fallthru
              _
          $region138: #{tpu_custom_call.1} parent=133 // pred_fallthru
            _
          %684 = vnop
        $region134: #{tpu_custom_call.1} parent=39 // pred_fallthru
          _
      $region40: #{tpu_custom_call.1} parent=5 // pred_fallthru
        _
      %p685 = scmp.le.s32.totalorder 2, %s18
      // Predicated region
      $region172: #{tpu_custom_call.1} parent=5 // pred_check
        %p686 = pneg %p685
      $region173: #{tpu_custom_call.1} parent=5 // pred_check_branch
        %688 = sbr.rel (%p686) target = $region175
      $region174: #{tpu_custom_call.1} parent=5 // pred_region
        %s689 = ssub.s32 %s18, 2
        // Predicated region
        $region176: #{tpu_custom_call.1} parent=174 // pred_check
          %p690 = pneg %p173
        $region177: #{tpu_custom_call.1} parent=174 // pred_check_branch
          %692 = sbr.rel (%p690) target = $region179
        $region178: #{tpu_custom_call.1} parent=174 // pred_region
          %s693 = sand.u32 %s158, 1
          %s694 = sand.u32 %s158, 1
          %s695 = smul.addr %s694, 16
          %s696 = scalar_lea.vmem [#allocation6], %s695
        $region179: #{tpu_custom_call.1} parent=174 // pred_fallthru
          _
        // Predicated region
        $region180: #{tpu_custom_call.1} parent=174 // pred_check
          %p697 = pneg %p201
        $region181: #{tpu_custom_call.1} parent=174 // pred_check_branch
          %699 = sbr.rel (%p697) target = $region183
        $region182: #{tpu_custom_call.1} parent=174 // pred_region
          %s700 = sand.u32 %s186, 1
          %s701 = sand.u32 %s186, 1
          %s702 = smul.addr %s701, 16
          %s703 = scalar_lea.vmem [#allocation7], %s702
        $region183: #{tpu_custom_call.1} parent=174 // pred_fallthru
          _
        // Predicated region
        $region184: #{tpu_custom_call.1} parent=174 // pred_check
          %p704 = pneg %p229
        $region185: #{tpu_custom_call.1} parent=174 // pred_check_branch
          %706 = sbr.rel (%p704) target = $region187
        $region186: #{tpu_custom_call.1} parent=174 // pred_region
          %s707 = sand.u32 %s214, 1
          %s708 = sand.u32 %s214, 1
          %s709 = smul.addr %s708, 16
          %s710 = scalar_lea.vmem [#allocation8], %s709
        $region187: #{tpu_custom_call.1} parent=174 // pred_fallthru
          _
      $region175: #{tpu_custom_call.1} parent=5 // pred_fallthru
        _
    $region6: #{tpu_custom_call.1} parent=1 // loop_footer
      %s22 = sadd.s32 1, %s18
    $region7: #{tpu_custom_call.1} parent=1 // loop_footer_branch
      %17 = sbr.rel target = $region3
    $region8: #{tpu_custom_call.1} parent=1 // loop_exit
      _
    %711 = vsyncpa [#allocation3], 1
    %s712 = scalar_lea.sflag [#allocation3], 1
    %713 = vsyncpa %s712, 1
    %714 = vsyncpa [#allocation5], 1

</llo_original>
